<compile_context>
chip_gen: v5e
topology: v5e:2x2
jax: 0.10.0
libtpu: 0.0.40
codegen_flags: <defaults>
</compile_context>

<pallas_src>
import functools

import jax
import jax.numpy as jnp
from jax.experimental import pallas as pl
from jax.experimental.pallas import tpu as pltpu


def _divisors_desc(n: int):
    return [d for d in range(n, 0, -1) if n % d == 0]


def _largest_divisor_leq(n: int, cap: int) -> int:
    cap = max(1, min(n, cap))
    for d in range(cap, 0, -1):
        if n % d == 0:
            return d
    return 1


def _tv_kernel(lm_ref, rm_ref, x_ref, out_ref, acc_ref, carry_ref, *,
               w, th, n_h, hf, fold, scale_h):
    """One (super_plane, row_tile) grid step.

    lm_ref:  (3, wk) lane masks (grid-invariant, resident):
               row 0: 0 or 1/count_w   (horizontal pairs: lane % w != 0)
               row 1: 0 or 1/count_h   (vertical-within-folded-row: lane >= w)
               row 2: 0 or 1           (lane < w; folded-row boundary lanes)
    rm_ref:  (th, 1) row mask: 0 or 1/count_h (folded-row boundary valid rows)
    x_ref:   (1, th, wk) input row tile
    """
    x = x_ref[0].astype(jnp.float32)                      # (th, wk)
    mh = lm_ref[0:1, :]

    # --- horizontal neighbours (lane shift by 1); mask kills original-row seams + wrap
    d1 = x - pltpu.roll(x, shift=1, axis=1)
    total = d1 * d1 * mh

    if fold:
        # --- vertical neighbours living in the same folded row (lane shift by w)
        mvw = lm_ref[1:2, :]
        x_lane = pltpu.roll(x, shift=w, axis=1)
        d2 = x - x_lane
        total = total + d2 * d2 * mvw
        if hf > 1:
            # --- vertical neighbours across folded rows (sublane shift of the lane-rolled tile)
            mlow = lm_ref[2:3, :]
            d3 = x - pltpu.roll(x_lane, shift=1, axis=0)
            total = total + d3 * d3 * mlow * rm_ref[...]
    elif hf > 1:
        # --- plain vertical neighbours (sublane shift by 1); row mask kills plane seams + wrap
        d3 = x - pltpu.roll(x, shift=1, axis=0)
        total = total + d3 * d3 * rm_ref[...]

    if n_h == 1:
        # Whole super plane in one tile: reduce directly, no accumulator traffic.
        out_ref[...] = jnp.full((1, 1, 128), jnp.sum(total), dtype=jnp.float32)
    else:
        j = pl.program_id(1)

        @pl.when(j == 0)
        def _init():
            acc_ref[...] = jnp.zeros_like(acc_ref)

        acc_ref[...] += total

        # Seam between consecutive row tiles of the same plane: single-row update.
        @pl.when(j > 0)
        def _seam():
            prev = carry_ref[...]                          # last folded row of previous tile
            if fold:
                ds = x[0:1, :] - pltpu.roll(prev, shift=w, axis=1)
                acc_ref[0:1, :] += ds * ds * (lm_ref[2:3, :] * scale_h)
            else:
                ds = x[0:1, :] - prev
                acc_ref[0:1, :] += ds * ds * scale_h

        carry_ref[...] = x[th - 1:th, :]

        @pl.when(j == n_h - 1)
        def _fin():
            out_ref[...] = jnp.full((1, 1, 128), jnp.sum(acc_ref[...]),
                                    dtype=jnp.float32)


def l_tv_pallas(x, tv_loss_weight: float = 1.0, *, max_block_bytes: int | None = None):
    """x: (N, C, H, W) float array. Returns scalar TV loss (matches torch L_TV)."""
    n, c, h, w = x.shape
    p = n * c
    itemsize = jnp.dtype(x.dtype).itemsize
    sub = {4: 8, 2: 16, 1: 32}.get(itemsize, 8)            # sublane packing multiple

    count_h = (h - 1) * w
    count_w = h * (w - 1)
    # Note: torch reference yields NaN (0/0) when H==1 or W==1; we return 0 for that term.
    scale_h = (1.0 / count_h) if count_h > 0 else 0.0
    scale_w = (1.0 / count_w) if count_w > 0 else 0.0

    # ---- chip-aware budgets -------------------------------------------------
    try:
        vmem_cap = int(pltpu.get_tpu_info().vmem_capacity_bytes)
    except Exception:
        vmem_cap = 64 * 1024 * 1024                         # conservative (v7x-sized)
    big_vmem = vmem_cap >= 100 * 1024 * 1024                # v5e / v6e (128 MiB)
    if max_block_bytes is None:
        max_block_bytes = (16 if big_vmem else 8) * 1024 * 1024
    base_limit = (96 if big_vmem else 48) * 1024 * 1024

    # ---- fold rows of the SAME plane into lanes (pure reshape, no transpose) -
    planes = x.reshape(p, h, w)
    r = 1
    if w < 128:
        for cand in _divisors_desc(h):
            if cand * w <= 256 and (cand * w) % 128 == 0:
                r = cand
                break
        if r == 1:
            r = _largest_divisor_leq(h, max(1, 128 // w))
    hf = h // r                                             # folded plane height
    wk = w * r                                              # folded lane width
    if r > 1:
        planes = planes.reshape(p, hf, wk)
    fold = r > 1

    # ---- stack g planes vertically into super planes (pure reshape) ---------
    row_bytes = wk * itemsize
    max_rows = max(sub, (max_block_bytes // row_bytes) // sub * sub)
    g = 1
    if p > 1 and hf < max_rows:
        g_cap = max(1, min(max_rows // hf, p // 2))          # keep >= 2 super planes (megacore)
        g = _largest_divisor_leq(p, g_cap)
    p2 = p // g
    super_rows = g * hf
    if g > 1:
        planes = planes.reshape(p2, super_rows, wk)

    # ---- row tiling: th | super_rows and aligned to folded plane height -----
    if super_rows <= max_rows:
        th = super_rows                                      # n_h == 1 (common case)
    else:
        th = 0                                               # here g == 1, super_rows == hf
        for d in _divisors_desc(hf):
            if d <= max_rows and d % sub == 0:
                th = d
                break
        if th == 0:
            th = super_rows                                  # fallback: whole plane per tile
    n_h = super_rows // th

    # ---- grid-invariant masks (scales folded in) -----------------------------
    lane = jnp.arange(wk, dtype=jnp.int32)
    mh = jnp.where(lane % w != 0, jnp.float32(scale_w), jnp.float32(0.0))
    mvw = jnp.where(lane >= w, jnp.float32(scale_h), jnp.float32(0.0))
    mlow = jnp.where(lane < w, jnp.float32(1.0), jnp.float32(0.0))
    lm = jnp.stack([mh, mvw, mlow]).astype(jnp.float32)      # (3, wk)

    fr = jnp.arange(th, dtype=jnp.int32)
    if th % hf == 0:
        valid = (fr % hf) != 0                               # tile boundary == plane boundary
    else:                                                    # th | hf: only row 0 is a seam row
        valid = fr != 0
    rmask = jnp.where(valid, jnp.float32(scale_h),
                      jnp.float32(0.0)).astype(jnp.float32)[:, None]  # (th, 1)

    # ---- VMEM limit ----------------------------------------------------------
    in_tile = th * wk * itemsize
    acc_bytes = th * wk * 4 if n_h > 1 else 8 * 128 * 4
    rmask_bytes = 2 * th * 128 * 4
    lm_bytes = 2 * 8 * max(wk, 128) * 4
    needed = 2 * in_tile + acc_bytes + rmask_bytes + lm_bytes + (4 << 20)
    vmem_limit = int(min(max(base_limit, needed), vmem_cap))

    if n_h == 1:
        scratch = [pltpu.VMEM((8, 128), jnp.float32),        # unused dummies
                   pltpu.VMEM((1, 128), jnp.float32)]
    else:
        scratch = [pltpu.VMEM((th, wk), jnp.float32),        # single merged accumulator
                   pltpu.VMEM((1, wk), jnp.float32)]         # seam carry row

    kernel = functools.partial(_tv_kernel, w=w, th=th, n_h=n_h, hf=hf,
                               fold=fold, scale_h=scale_h)

    partials = pl.pallas_call(
        kernel,
        out_shape=jax.ShapeDtypeStruct((p2, 1, 128), jnp.float32),
        grid_spec=pltpu.PrefetchScalarGridSpec(
            num_scalar_prefetch=0,
            grid=(p2, n_h),                                  # reduction (row-tile) axis last
            in_specs=[
                pl.BlockSpec((3, wk), lambda i, j: (0, 0)),   # lane masks (resident)
                pl.BlockSpec((th, 1), lambda i, j: (0, 0)),   # row mask   (resident)
                pl.BlockSpec((1, th, wk), lambda i, j: (i, j, 0)),
            ],
            out_specs=pl.BlockSpec((1, 1, 128), lambda i, j: (i, 0, 0)),
            scratch_shapes=scratch,
        ),
        compiler_params=pltpu.CompilerParams(
            dimension_semantics=("parallel", "arbitrary"),
            vmem_limit_bytes=vmem_limit,
        ),
        cost_estimate=pl.CostEstimate(
            flops=8 * x.size,
            transcendentals=0,
            bytes_accessed=x.size * itemsize + p2 * 128 * 4 + (3 * wk + th) * 4,
        ),
    )(lm, rmask, planes)

    total = jnp.sum(partials[:, 0, 0])
    return tv_loss_weight * 2.0 * total / n


def l_tv_reference(x, tv_loss_weight=1.0):
    """Pure-JAX reference mirroring the PyTorch forward."""
    n, c, h, w = x.shape
    count_h = (h - 1) * w
    count_w = h * (w - 1)
    h_tv = jnp.sum((x[:, :, 1:, :] - x[:, :, :-1, :]) ** 2)
    w_tv = jnp.sum((x[:, :, :, 1:] - x[:, :, :, :-1]) ** 2)
    return tv_loss_weight * 2.0 * (h_tv / count_h + w_tv / count_w) / n


if __name__ == "__main__":
    # NCHW image batch (shape implied by the module's forward).
    x = jax.random.uniform(jax.random.PRNGKey(0), (2, 4, 16, 16), dtype=jnp.float32)
    out = jax.block_until_ready(l_tv_pallas(x))
    ref = jax.block_until_ready(l_tv_reference(x))
    assert jnp.allclose(out, ref, rtol=1e-4, atol=1e-5), (out, ref)

    # Exercises the row-tiling / seam-carry / accumulator path (forced tiny tiles).
    x2 = jax.random.uniform(jax.random.PRNGKey(1), (1, 2, 48, 128), dtype=jnp.float32)
    out2 = jax.block_until_ready(l_tv_pallas(x2, max_block_bytes=16 * 1024))
    ref2 = jax.block_until_ready(l_tv_reference(x2))
    assert jnp.allclose(out2, ref2, rtol=1e-4, atol=1e-5), (out2, ref2)

    print("KERNEL_OK")
</pallas_src>

<mosaic_0001>
module attributes {stable_mosaic.version = 11 : i64} {
  func.func @_tv_kernel(%arg0: i32, %arg1: i32, %arg2: memref<3x256xf32, #tpu.memory_space<vmem>>, %arg3: memref<4x1xf32, #tpu.memory_space<vmem>>, %arg4: memref<1x4x256xf32, #tpu.memory_space<vmem>>, %arg5: memref<1x1x128xf32, #tpu.memory_space<vmem>>, %arg6: memref<8x128xf32, #tpu.memory_space<vmem>>, %arg7: memref<1x128xf32, #tpu.memory_space<vmem>>) attributes {dimension_semantics = [#tpu.dimension_semantics<parallel>, #tpu.dimension_semantics<arbitrary>], iteration_bounds = array<i64: 2, 1>, scalar_prefetch = 0 : i64, scratch_operands = 2 : i64, tpu.core_type = #tpu.core_type<tc>, window_params = [{pipeline_mode = #tpu.pipeline_mode<synchronous>, transform_indices = @transform_0, window_bounds = array<i64: 3, 256>}, {pipeline_mode = #tpu.pipeline_mode<synchronous>, transform_indices = @transform_1, window_bounds = array<i64: 4, 1>}, {transform_indices = @transform_2, window_bounds = array<i64: 1, 4, 256>}, {transform_indices = @transform_3, window_bounds = array<i64: 1, 1, 128>}]} {
    %c0 = arith.constant 0 : index
    %c0_0 = arith.constant 0 : index
    %c0_1 = arith.constant 0 : index
    %0 = vector.load %arg4[%c0, %c0_0, %c0_1] : memref<1x4x256xf32, #tpu.memory_space<vmem>>, vector<1x4x256xf32>
    %1 = vector.shape_cast %0 : vector<1x4x256xf32> to vector<4x256xf32>
    %c0_2 = arith.constant 0 : index
    %c0_3 = arith.constant 0 : index
    %2 = vector.load %arg2[%c0_2, %c0_3] : memref<3x256xf32, #tpu.memory_space<vmem>>, vector<1x256xf32>
    %c1_i32 = arith.constant 1 : i32
    %3 = tpu.dynamic_rotate %1 by %c1_i32 dim 1 : vector<4x256xf32>, i32 -> vector<4x256xf32>
    %4 = arith.subf %1, %3 : vector<4x256xf32>
    %5 = arith.mulf %4, %4 : vector<4x256xf32>
    %6 = vector.broadcast %2 : vector<1x256xf32> to vector<4x256xf32>
    %7 = arith.mulf %5, %6 : vector<4x256xf32>
    %c1 = arith.constant 1 : index
    %c0_4 = arith.constant 0 : index
    %8 = vector.load %arg2[%c1, %c0_4] : memref<3x256xf32, #tpu.memory_space<vmem>>, vector<1x256xf32>
    %c16_i32 = arith.constant 16 : i32
    %9 = tpu.dynamic_rotate %1 by %c16_i32 dim 1 : vector<4x256xf32>, i32 -> vector<4x256xf32>
    %10 = arith.subf %1, %9 : vector<4x256xf32>
    %11 = arith.mulf %10, %10 : vector<4x256xf32>
    %12 = vector.broadcast %8 : vector<1x256xf32> to vector<4x256xf32>
    %13 = arith.mulf %11, %12 : vector<4x256xf32>
    %14 = arith.addf %7, %13 : vector<4x256xf32>
    %15 = vector.shape_cast %14 : vector<4x256xf32> to vector<1x4x256xf32>
    %cst = arith.constant dense<0.000000e+00> : vector<1xf32>
    %16 = vector.multi_reduction <add>, %15, %cst [1, 2] : vector<1x4x256xf32> to vector<1xf32>
    %17 = vector.shape_cast %16 : vector<1xf32> to vector<1x1x1xf32>
    %18 = vector.extract %17[0, 0, 0] : f32 from vector<1x1x1xf32>
    %19 = vector.broadcast %18 : f32 to vector<1x1x128xf32>
    %c0_5 = arith.constant 0 : index
    %c0_6 = arith.constant 0 : index
    %c0_7 = arith.constant 0 : index
    %20 = vector.load %arg5[%c0_5, %c0_6, %c0_7] : memref<1x1x128xf32, #tpu.memory_space<vmem>>, vector<1x1x128xf32>
    tpu.vector_store %arg5[%c0_5, %c0_6, %c0_7], %19 {strides = array<i32>} : memref<1x1x128xf32, #tpu.memory_space<vmem>>, vector<1x1x128xf32>,
    return
  }
  func.func @transform_0(%arg0: i32, %arg1: i32) -> (i32, i32) {
    %c0_i32 = arith.constant 0 : i32
    %c0_i32_0 = arith.constant 0 : i32
    %c0_i32_1 = arith.constant 0 : i32
    return %c0_i32, %c0_i32_0 : i32, i32
  }
  func.func @transform_1(%arg0: i32, %arg1: i32) -> (i32, i32) {
    %c0_i32 = arith.constant 0 : i32
    %c0_i32_0 = arith.constant 0 : i32
    %c0_i32_1 = arith.constant 0 : i32
    return %c0_i32, %c0_i32_0 : i32, i32
  }
  func.func @transform_2(%arg0: i32, %arg1: i32) -> (i32, i32, i32) {
    %c0_i32 = arith.constant 0 : i32
    %c0_i32_0 = arith.constant 0 : i32
    return %arg0, %arg1, %c0_i32 : i32, i32, i32
  }
  func.func @transform_3(%arg0: i32, %arg1: i32) -> (i32, i32, i32) {
    %c0_i32 = arith.constant 0 : i32
    %c0_i32_0 = arith.constant 0 : i32
    %c0_i32_1 = arith.constant 0 : i32
    return %arg0, %c0_i32, %c0_i32_0 : i32, i32, i32
  }
}

</mosaic_0001>

<llo_original>
// kernel: tpu_custom_call.1
$region0: #{tpu_custom_call.1}
  #allocation0 [shape = 'u32[]', space=smem, size = 0x4, offset = 0x4, fixed_abs, tag = 'smem constant byte address 0x4 - core index']
  #allocation1 [shape = 'u32[72,128]{1,0:T(1,128)}', space=vmem, size = 0x9000, scoped, tag = 'internal scratch']
  #allocation2 [shape = 'f32[8,128]{1,0:T(8,128)}', space=vmem, size = 0x1000, scoped, tag = 'scratch operand']
  #allocation3 [shape = 'f32[1,128]{1,0:T(1,128)}', space=vmem, size = 0x200, scoped, tag = 'scratch operand']
  %s0 = inlined_call_operand.hbm [shape: f32[3,256], index: 0, kind: input, shape index: {}]
  %s1 = inlined_call_operand.vmem [shape: f32[4,1], index: 1, kind: input, shape index: {}]
  %s2 = inlined_call_operand.hbm [shape: f32[2,4,256], index: 2, kind: input, shape index: {}]
  %s3 = inlined_call_operand.hbm [shape: f32[2,1,128], index: 3, kind: output, shape index: {}]
  %s4 = sld [smem:[#allocation0]]
  $region53: #{tpu_custom_call.1} parent=0
    _
  %s6 = ssub.s32 1, %s4
  %s7 = scalar_select 0, %s6, %s4
  $region1: #{tpu_custom_call.1} parent=0
    #allocation4 [shape = 'u8[4096]{0}', space=vmem, size = 0x1000, scoped, tag = 'input window, operand 0, single buffered']
    #allocation5 [shape = 's32[2]{0}', space=sflag, size = 0x8, scoped, tag = 'scoped memory for tpu_custom_call.1']
    #allocation6 [shape = 's32[2]{0}', space=sflag, size = 0x8, scoped, tag = 'scoped memory for tpu_custom_call.1']
    #allocation7 [shape = 'u8[8192]{0}', space=vmem, size = 0x2000, scoped, tag = 'input window, operand 2']
    #allocation8 [shape = 's32[2]{0}', space=sflag, size = 0x8, scoped, tag = 'scoped memory for tpu_custom_call.1']
    #allocation9 [shape = 'u8[1024]{0}', space=vmem, size = 0x400, scoped, tag = 'output window, operand 0']
    %8 = vsyncpa [#allocation5], 0
    %9 = vsyncpa [#allocation8], 0
    %s10 = scalar_lea.sflag [#allocation8], 1
    %11 = vsyncpa %s10, 0
    %12 = vsyncpa [#allocation6], 0
    %s13 = scalar_lea.sflag [#allocation6], 1
    %14 = vsyncpa %s13, 0
    loop: start=0, step=1, limit=4
    $region2: #{tpu_custom_call.1} parent=1 // loop_pre_header
      _
    $region3: #{tpu_custom_call.1} parent=1 // loop_header
      %s16 = sphi 0, %s20
      %p17 = scmp.ge.s32.totalorder %s16, 4
      %s23 = sphi 0, %s35
      %s24 = sphi 0, %s31
      %s25 = sphi 0, %s23
      %s26 = sphi 0, %s24
      %s27 = sphi 0, %s25
      %s28 = sphi 0, %s26
      %s36 = sphi 0, %s36
      %s38 = sphi 0, %s36
      %s39 = sphi 0, %s38
      %s53 = sphi 0, %s39
      %s57 = sphi 0, %s57
      %s59 = sphi 0, %s57
      %s60 = sphi 0, %s59
      %s74 = sphi 0, %s60
      %s82 = sphi 0, %s84
      %s85 = sphi 0, %s82
      %s86 = sphi 0, %s85
      %s102 = sphi 0, %s86
      %s108 = sphi 0, %s110
      %s111 = sphi 0, %s108
      %s112 = sphi 0, %s111
      %s128 = sphi 0, %s112
    $region4: #{tpu_custom_call.1} parent=1 // loop_header_branch
      %19 = sbr.rel (%p17) target = $region8
    $region5: #{tpu_custom_call.1} parent=1 // loop_body
      %s21 = ssub.s32 %s16, 1
      %s22 = ssub.s32 %s16, 2
      %s29 = sadd.s32 1, %s24
      %p30 = scmp.ge.s32.totalorder %s29, 1
      %s31 = scalar_select %p30, 0, %s29
      %s32 = sadd.s32 1, %s23
      %s33 = scalar_select %p30, %s32, %s23
      %p34 = scmp.ge.s32.totalorder %s33, 2
      %s35 = scalar_select %p34, 0, %s33
      %s37 = sadd.s32 %s36, 1
      %p40 = scmp.eq.s32.totalorder %s16, 1
      %p41 = scmp.ne.s32.totalorder %s36, %s38
      %p42 = scmp.eq.s32.totalorder %s16, 0
      %p43 = por %p41, %p42
      %p44 = scmp.ne.s32.totalorder %s36, %s38
      %p45 = scmp.eq.s32.totalorder %s21, 1
      %p46 = por %p44, %p45
      %p47 = scmp.ne.s32.totalorder %s38, %s39
      %p48 = scmp.eq.s32.totalorder %s21, 0
      %p49 = por %p47, %p48
      %p50 = scmp.ne.s32.totalorder %s38, %s39
      %p51 = scmp.eq.s32.totalorder %s22, 1
      %p52 = por %p50, %p51
      %p54 = scmp.ne.s32.totalorder %s39, %s53
      %p55 = scmp.eq.s32.totalorder %s22, 0
      %p56 = por %p54, %p55
      %s58 = sadd.s32 %s57, 1
      %p61 = scmp.eq.s32.totalorder %s16, 1
      %p62 = scmp.ne.s32.totalorder %s57, %s59
      %p63 = scmp.eq.s32.totalorder %s16, 0
      %p64 = por %p62, %p63
      %p65 = scmp.ne.s32.totalorder %s57, %s59
      %p66 = scmp.eq.s32.totalorder %s21, 1
      %p67 = por %p65, %p66
      %p68 = scmp.ne.s32.totalorder %s59, %s60
      %p69 = scmp.eq.s32.totalorder %s21, 0
      %p70 = por %p68, %p69
      %p71 = scmp.ne.s32.totalorder %s59, %s60
      %p72 = scmp.eq.s32.totalorder %s22, 1
      %p73 = por %p71, %p72
      %p75 = scmp.ne.s32.totalorder %s60, %s74
      %p76 = scmp.eq.s32.totalorder %s22, 0
      %p77 = por %p75, %p76
      %s78 = ssub.s32 %s23, %s35
      %s79 = ssub.s32 %s24, %s31
      %s80 = sor.u32 %s78, %s79
      %p81 = scmp.eq.s32.totalorder %s80, 0
      %s83 = sadd.s32 %s82, 1
      %s84 = scalar_select %p81, %s82, %s83
      %p87 = pneg %p81
      %p88 = scmp.eq.s32.totalorder %s16, 1
      %p89 = por %p87, %p88
      %p90 = scmp.ne.s32.totalorder %s82, %s85
      %p91 = scmp.eq.s32.totalorder %s16, 0
      %p92 = por %p90, %p91
      %p93 = scmp.ne.s32.totalorder %s82, %s85
      %p94 = scmp.eq.s32.totalorder %s21, 1
      %p95 = por %p93, %p94
      %p96 = scmp.ne.s32.totalorder %s85, %s86
      %p97 = scmp.eq.s32.totalorder %s21, 0
      %p98 = por %p96, %p97
      %p99 = scmp.ne.s32.totalorder %s85, %s86
      %p100 = scmp.eq.s32.totalorder %s22, 1
      %p101 = por %p99, %p100
      %p103 = scmp.ne.s32.totalorder %s86, %s102
      %p104 = scmp.eq.s32.totalorder %s22, 0
      %p105 = por %p103, %p104
      %s106 = ssub.s32 %s23, %s35
      %p107 = scmp.eq.s32.totalorder %s106, 0
      %s109 = sadd.s32 %s108, 1
      %s110 = scalar_select %p107, %s108, %s109
      %p113 = pneg %p107
      %p114 = scmp.eq.s32.totalorder %s16, 1
      %p115 = por %p113, %p114
      %p116 = scmp.ne.s32.totalorder %s108, %s111
      %p117 = scmp.eq.s32.totalorder %s16, 0
      %p118 = por %p116, %p117
      %p119 = scmp.ne.s32.totalorder %s108, %s111
      %p120 = scmp.eq.s32.totalorder %s21, 1
      %p121 = por %p119, %p120
      %p122 = scmp.ne.s32.totalorder %s111, %s112
      %p123 = scmp.eq.s32.totalorder %s21, 0
      %p124 = por %p122, %p123
      %p125 = scmp.ne.s32.totalorder %s111, %s112
      %p126 = scmp.eq.s32.totalorder %s22, 1
      %p127 = por %p125, %p126
      %p129 = scmp.ne.s32.totalorder %s112, %s128
      %p130 = scmp.eq.s32.totalorder %s22, 0
      %p131 = por %p129, %p130
      %p132 = scmp.le.s32.totalorder 1, %s16
      %p133 = scmp.lt.s32.totalorder %s16, 3
      %p134 = pnand %p132, %p133
      %p135 = pneg %p134
      // Predicated region
      $region9: #{tpu_custom_call.1} parent=5 // pred_check
        _
      $region10: #{tpu_custom_call.1} parent=5 // pred_check_branch
        %137 = sbr.rel (%p134) target = $region12
      $region11: #{tpu_custom_call.1} parent=5 // pred_region
        %s138 = ssub.s32 %s16, 1
        // Predicated region
        $region13: #{tpu_custom_call.1} parent=11 // pred_check
          %p139 = pneg %p49
        $region14: #{tpu_custom_call.1} parent=11 // pred_check_branch
          %141 = sbr.rel (%p139) target = $region16
        $region15: #{tpu_custom_call.1} parent=11 // pred_region
          %143 = vsyncadd [#allocation5], 0
          %s145 = sshll.u32 %s0, 4
          %s146 = int_to_ptr.hbm [resolvable:$true] %s145
          %s147 = sshll.u32 [#allocation4], 4
          %s148 = int_to_ptr.vmem [resolvable:$true] %s147
          %150 = dma.hbm_to_vmem [thread:$0]  %s146, 128, %s148, [#allocation5]
        $region16: #{tpu_custom_call.1} parent=11 // pred_fallthru
          _
        // Predicated region
        $region17: #{tpu_custom_call.1} parent=11 // pred_check
          %p151 = pneg %p70
        $region18: #{tpu_custom_call.1} parent=11 // pred_check_branch
          %153 = sbr.rel (%p151) target = $region20
        $region19: #{tpu_custom_call.1} parent=11 // pred_region
          _
        $region20: #{tpu_custom_call.1} parent=11 // pred_fallthru
          _
      $region12: #{tpu_custom_call.1} parent=5 // pred_fallthru
        _
      %p154 = scmp.lt.s32.totalorder %s16, 2
      // Predicated region
      $region21: #{tpu_custom_call.1} parent=5 // pred_check
        %p155 = pneg %p154
      $region22: #{tpu_custom_call.1} parent=5 // pred_check_branch
        %157 = sbr.rel (%p155) target = $region24
      $region23: #{tpu_custom_call.1} parent=5 // pred_region
        // Predicated region
        $region25: #{tpu_custom_call.1} parent=23 // pred_check
          %p158 = pneg %p92
        $region26: #{tpu_custom_call.1} parent=23 // pred_check_branch
          %160 = sbr.rel (%p158) target = $region28
        $region27: #{tpu_custom_call.1} parent=23 // pred_region
          %s161 = sand.u32 %s82, 1
          %s162 = scalar_lea.sflag [#allocation8], %s161
          %s163 = sand.u32 %s82, 1
          %s164 = smul.addr %s163, 8
          %s165 = scalar_lea.vmem [#allocation7], %s164
          %167 = vsyncadd %s162, 0
          %s168 = smul.addr %s24, 2
          %s169 = smul.addr %s23, 2
          %s170 = sadd.s32 %s168, %s169
          %s171 = smul.addr %s170, 4
          %s172 = scalar_lea.hbm %s2, %s171
          %s174 = sshll.u32 %s172, 4
          %s175 = int_to_ptr.hbm [resolvable:$true] %s174
          %s176 = sshll.u32 %s165, 4
          %s177 = int_to_ptr.vmem [resolvable:$true] %s176
          %179 = dma.hbm_to_vmem [thread:$0]  %s175, 128, %s177, %s162
        $region28: #{tpu_custom_call.1} parent=23 // pred_fallthru
          _
      $region24: #{tpu_custom_call.1} parent=5 // pred_fallthru
        _
      %p180 = scmp.le.s32.totalorder 1, %s16
      %p181 = scmp.lt.s32.totalorder %s16, 3
      %p182 = pnand %p180, %p181
      %p183 = pneg %p182
      // Predicated region
      $region29: #{tpu_custom_call.1} parent=5 // pred_check
        _
      $region30: #{tpu_custom_call.1} parent=5 // pred_check_branch
        %185 = sbr.rel (%p182) target = $region32
      $region31: #{tpu_custom_call.1} parent=5 // pred_region
        %s186 = ssub.s32 %s16, 1
        // Predicated region
        $region33: #{tpu_custom_call.1} parent=31 // pred_check
          %p187 = pneg %p49
        $region34: #{tpu_custom_call.1} parent=31 // pred_check_branch
          %189 = sbr.rel (%p187) target = $region36
        $region35: #{tpu_custom_call.1} parent=31 // pred_region
          %191 = dma.done [#allocation5], 128
        $region36: #{tpu_custom_call.1} parent=31 // pred_fallthru
          _
        %s192 = sand.u32 %s85, 1
        %s193 = scalar_lea.sflag [#allocation8], %s192
        %s194 = sand.u32 %s85, 1
        %s195 = smul.addr %s194, 8
        %s196 = scalar_lea.vmem [#allocation7], %s195
        // Predicated region
        $region37: #{tpu_custom_call.1} parent=31 // pred_check
          %p197 = pneg %p98
        $region38: #{tpu_custom_call.1} parent=31 // pred_check_branch
          %199 = sbr.rel (%p197) target = $region40
        $region39: #{tpu_custom_call.1} parent=31 // pred_region
          %201 = dma.done %s193, 128
        $region40: #{tpu_custom_call.1} parent=31 // pred_fallthru
          _
        %p202 = pneg %p49
        %p203 = pneg %p46
        %p204 = pneg %p70
        %p205 = pneg %p67
        %s206 = sand.u32 %s85, 1
        %s207 = scalar_lea.sflag [#allocation8], %s206
        %s208 = sand.u32 %s85, 1
        %s209 = smul.addr %s208, 8
        %s210 = scalar_lea.vmem [#allocation7], %s209
        %p211 = pneg %p98
        %p212 = pneg %p95
        %p213 = pneg %p124
        %p214 = pneg %p121
        %s215 = sand.u32 %s111, 1
        %s216 = scalar_lea.sflag [#allocation6], %s215
        %s217 = sand.u32 %s111, 1
        %s218 = scalar_lea.vmem [#allocation9], %s217
        %v219 = vld [vmem:[%s196] sm:$0xff]
        %v220 = vld [vmem:[#allocation4] ss:$4 sm:$0x3]
        %222 = vst [vmem:[#allocation1] ss:$2 sm:$0xff] %v219
        %v223 = vld.sshfl [vmem:[#allocation1] sm:$0xff pattern:$0x75316420]
        %v224 = vld.sshfl [vmem:[#allocation1 + $0x8] sm:$0xff pattern:$0x75316420]
        %227 = vrot.lane.b32.xlu0 %v223, 1
        %v228 = vpop.permute.xlu0 %227
        %229 = vrot.lane.b32.xlu0 %v224, 1
        %v230 = vpop.permute.xlu0 %229
        %v231 = vlaneseq
        %v232 = vand.u32 %v231, 127
        %vm233 = vcmp.lt.s32.totalorder %v232, 1
        %v234 = vsel %vm233, %v228, %v230
        %v235 = vsel %vm233, %v230, %v228
        %v238 = vrot.slane %v234, 4
        %vm239 = vcmask 1043456
        %v240 = vsel %vm239, %v235, %v238
        %v242 = vsub.f32 %v219, %v240
        %v243 = vmul.f32 %v242, %v242
        %v245 = vperm.slane %v220, 0
        %v246 = vperm.slane %v220, 1
        %v247 = vrot.slane %v246, 4
        %v248 = vsel %vm239, %v245, %v247
        %v250 = vmul.f32 %v243, %v248
        %s251 = scalar_lea.vmem [#allocation4], 1
        %v252 = vld [vmem:[%s251] ss:$4 sm:$0x3]
        %253 = vst [vmem:[#allocation1] ss:$2 sm:$0xff] %v219
        %v254 = vld.sshfl [vmem:[#allocation1] sm:$0xff pattern:$0x75316420]
        %v255 = vld.sshfl [vmem:[#allocation1 + $0x8] sm:$0xff pattern:$0x75316420]
        %258 = vrot.lane.b32.xlu0 %v254, 16
        %v259 = vpop.permute.xlu0 %258
        %260 = vrot.lane.b32.xlu0 %v255, 16
        %v261 = vpop.permute.xlu0 %260
        %vm262 = vcmp.lt.s32.totalorder %v232, 16
        %v263 = vsel %vm262, %v259, %v261
        %v264 = vsel %vm262, %v261, %v259
        %v267 = vrot.slane %v263, 4
        %v268 = vsel %vm239, %v264, %v267
        %v270 = vsub.f32 %v219, %v268
        %v271 = vmul.f32 %v270, %v270
        %v273 = vperm.slane %v252, 0
        %v274 = vperm.slane %v252, 1
        %v275 = vrot.slane %v274, 4
        %v276 = vsel %vm239, %v273, %v275
        %v278 = vmul.f32 %v271, %v276
        %v279 = vadd.f32 %v250, %v278
        %281 = vst [vmem:[#allocation1] ss:$2 sm:$0xff] %v279
        %v282 = vld.sshfl [vmem:[#allocation1] sm:$0xff pattern:$0x75316420]
        %v283 = vld.sshfl [vmem:[#allocation1 + $0x8] sm:$0xff pattern:$0x75316420]
        %v286 = vsel %vm239, %v282, 0.0
        %v287 = vsel %vm239, %v283, 0.0
        %v288 = vadd.f32 %v286, %v287
        %289 = vadd.xlane.f32.xlu0 %v288
        %v290 = vpop.xlane.xlu0 %289
        %v291 = vrot.slane %v290, 4
        %v292 = vadd.f32 %v290, %v291
        %v293 = vrot.slane %v292, 2
        %v294 = vadd.f32 %v292, %v293
        %v295 = vrot.slane %v294, 1
        %v296 = vadd.f32 %v294, %v295
        %s297 = vtos %v296
        %v298 = vstv %s297
        %299 = vst [vmem:[%s218] sm:$0x1] %v298
        %s300 = sand.u32 %s111, 1
        %s301 = scalar_lea.sflag [#allocation6], %s300
        %s302 = sand.u32 %s111, 1
        %s303 = scalar_lea.vmem [#allocation9], %s302
        // Predicated region
        $region41: #{tpu_custom_call.1} parent=31 // pred_check
          %p304 = pneg %p121
        $region42: #{tpu_custom_call.1} parent=31 // pred_check_branch
          %306 = sbr.rel (%p304) target = $region44
        $region43: #{tpu_custom_call.1} parent=31 // pred_region
          %308 = vsyncadd %s301, 0
          %s309 = scalar_lea.hbm %s3, %s25
          %s311 = sshll.u32 %s303, 4
          %s312 = int_to_ptr.vmem [resolvable:$true] %s311
          %s313 = sshll.u32 %s309, 4
          %s314 = int_to_ptr.hbm [resolvable:$true] %s313
          %316 = dma.vmem_to_hbm [thread:$0]  %s312, 16, %s314, %s301
        $region44: #{tpu_custom_call.1} parent=31 // pred_fallthru
          _
      $region32: #{tpu_custom_call.1} parent=5 // pred_fallthru
        _
      %p317 = scmp.le.s32.totalorder 2, %s16
      // Predicated region
      $region45: #{tpu_custom_call.1} parent=5 // pred_check
        %p318 = pneg %p317
      $region46: #{tpu_custom_call.1} parent=5 // pred_check_branch
        %320 = sbr.rel (%p318) target = $region48
      $region47: #{tpu_custom_call.1} parent=5 // pred_region
        %s321 = ssub.s32 %s16, 2
        // Predicated region
        $region49: #{tpu_custom_call.1} parent=47 // pred_check
          %p322 = pneg %p127
        $region50: #{tpu_custom_call.1} parent=47 // pred_check_branch
          %324 = sbr.rel (%p322) target = $region52
        $region51: #{tpu_custom_call.1} parent=47 // pred_region
          %s325 = sand.u32 %s112, 1
          %s326 = scalar_lea.sflag [#allocation6], %s325
          %s327 = sand.u32 %s112, 1
          %s328 = scalar_lea.vmem [#allocation9], %s327
          %330 = dma.done %s326, 16
        $region52: #{tpu_custom_call.1} parent=47 // pred_fallthru
          _
      $region48: #{tpu_custom_call.1} parent=5 // pred_fallthru
        _
    $region6: #{tpu_custom_call.1} parent=1 // loop_footer
      %s20 = sadd.s32 1, %s16
    $region7: #{tpu_custom_call.1} parent=1 // loop_footer_branch
      %15 = sbr.rel target = $region3
    $region8: #{tpu_custom_call.1} parent=1 // loop_exit
      _
    %331 = vsyncpa [#allocation5], 1
    %s332 = scalar_lea.sflag [#allocation5], 1
    %333 = vsyncpa %s332, 1
    %334 = vsyncpa [#allocation8], 1
    %s335 = scalar_lea.sflag [#allocation8], 1
    %336 = vsyncpa %s335, 1
    %337 = vsyncpa [#allocation6], 1
    %s338 = scalar_lea.sflag [#allocation6], 1
    %339 = vsyncpa %s338, 1

</llo_original>
